<compile_context>
chip_gen: v6e
topology: v6e:2x2x1
jax: 0.10.0
libtpu: 0.0.40
codegen_flags: <defaults>
</compile_context>

<pallas_src>
import jax
import jax.numpy as jnp
from jax import lax
from jax.experimental import pallas as pl
from jax.experimental.pallas import tpu as pltpu

LANES = 128
SUBLANES = 8
MAX_TILE_ROWS = 2048   # (2048, 128) f32 block = 1 MiB; fits v5e's 16 MiB scoped VMEM
NUM_SPLITS = 2         # outer "parallel" axis -> 2 TensorCores on v7x


def _round_up(x, m):
    return (x + m - 1) // m * m


def _make_kernel(tile_rows, steps_per_split, rows_total, needs_mask):
    """Builds the kernel with static tiling parameters closed over."""

    def kernel(x_ref, y_ref, m_ref, mae_ref, mse_ref, msk_ref):
        i = pl.program_id(1)   # inner (reduction) axis

        @pl.when(i == 0)
        def _():
            mae_ref[...] = jnp.zeros_like(mae_ref)
            mse_ref[...] = jnp.zeros_like(mse_ref)
            msk_ref[...] = jnp.zeros_like(msk_ref)

        x = x_ref[...].astype(jnp.float32)
        y = y_ref[...].astype(jnp.float32)
        m = m_ref[...].astype(jnp.float32)

        diff = x - y
        if needs_mask:
            # Static Python flag: only emitted when the grid over-covers the
            # array (partial / duplicated-clamped tail blocks).  Zero the
            # out-of-range rows so garbage reads contribute nothing.
            row0 = (pl.program_id(0) * steps_per_split + i) * tile_rows
            ridx = lax.broadcasted_iota(jnp.int32, (tile_rows, LANES), 0)
            valid = (row0 + ridx) < rows_total
            diff = jnp.where(valid, diff, 0.0)
            m = jnp.where(valid, m, 0.0)

        md = diff * m   # mask >= 0  =>  |diff| * m == |md|

        def fold(v):
            # (tile_rows, 128) -> (8, 128) partial sums; layout-aligned reshape.
            return jnp.sum(
                v.reshape(tile_rows // SUBLANES, SUBLANES, LANES), axis=0)

        mae_ref[0] += fold(jnp.abs(md))
        mse_ref[0] += fold(md * diff)
        msk_ref[0] += fold(m)

    return kernel


def masked_mae(input_, target, mask):
    """Pallas implementation of Masked_mae.forward. Returns a scalar f32."""

    def prep(a):
        a = jnp.ravel(a)
        if not jnp.issubdtype(a.dtype, jnp.floating):
            a = a.astype(jnp.float32)   # bool / int masks
        return a

    x, y, m = prep(input_), prep(target), prep(mask)
    n = x.shape[0]

    rows = pl.cdiv(n, LANES)
    rows = max(rows, SUBLANES)           # guarantee at least one (8,128) tile
    pad = rows * LANES - n
    if pad:
        # Only copies when n isn't lane-aligned; zero mask => no contribution.
        x = jnp.pad(x, (0, pad))
        y = jnp.pad(y, (0, pad))
        m = jnp.pad(m, (0, pad))
    x2 = x.reshape(rows, LANES)
    y2 = y.reshape(rows, LANES)
    m2 = m.reshape(rows, LANES)

    # Tile rows: largest multiple of 8 that is <= rows and <= MAX_TILE_ROWS,
    # so block 0 never exceeds the array extent (tail blocks may be partial).
    tile_rows = min(MAX_TILE_ROWS, (rows // SUBLANES) * SUBLANES)
    steps_total = pl.cdiv(rows, tile_rows)
    sps = pl.cdiv(steps_total, NUM_SPLITS)          # inner steps per split
    needs_mask = (NUM_SPLITS * sps * tile_rows) != rows

    def in_map(s, i):
        # Clamp so duplicated / overhanging block indices never DMA a fully
        # out-of-bounds block; the in-kernel row mask zeroes their contribution.
        return (jnp.minimum(s * sps + i, steps_total - 1), 0)

    in_spec = pl.BlockSpec((tile_rows, LANES), in_map)
    out_spec = pl.BlockSpec((1, SUBLANES, LANES), lambda s, i: (s, 0, 0))
    part_shape = jax.ShapeDtypeStruct((NUM_SPLITS, SUBLANES, LANES), jnp.float32)

    kernel = _make_kernel(tile_rows, sps, rows, needs_mask)

    mae_p, mse_p, msk_p = pl.pallas_call(
        kernel,
        out_shape=(part_shape, part_shape, part_shape),
        grid_spec=pltpu.PrefetchScalarGridSpec(
            num_scalar_prefetch=0,
            grid=(NUM_SPLITS, sps),
            in_specs=[in_spec, in_spec, in_spec],
            out_specs=(out_spec, out_spec, out_spec),
        ),
        compiler_params=pltpu.CompilerParams(
            dimension_semantics=("parallel", "arbitrary"),
        ),
    )(x2, y2, m2)

    # Tiny final reduction over 3 x (NUM_SPLITS, 8, 128) partials in plain JAX.
    denom = jnp.sum(msk_p)
    return (jnp.sum(mae_p) + jnp.sum(mse_p)) / denom * 0.5


def masked_mae_ref(input_, target, mask):
    """Pure-JAX reference (mirrors the PyTorch module)."""
    x = input_.astype(jnp.float32)
    y = target.astype(jnp.float32)
    m = mask.astype(jnp.float32)
    mask_sum = jnp.sum(m)
    mae = jnp.sum(jnp.abs(x - y) * m) / mask_sum
    mse = jnp.sum(m * (x - y) ** 2) / mask_sum
    return (mae + mse) / 2.0


if __name__ == "__main__":
    key = jax.random.PRNGKey(0)
    k1, k2, k3 = jax.random.split(key, 3)

    # NCHW-shaped example, consistent with a typical use of this loss.
    shape = (2, 4, 16, 16)
    input_ = jax.random.normal(k1, shape, dtype=jnp.float32)
    target = jax.random.normal(k2, shape, dtype=jnp.float32)
    mask = (jax.random.uniform(k3, shape) > 0.3).astype(jnp.float32)

    out = masked_mae(input_, target, mask)
    out = jax.block_until_ready(out)

    ref = masked_mae_ref(input_, target, mask)
    assert jnp.allclose(out, ref, rtol=1e-5, atol=1e-5), (out, ref)

    print("KERNEL_OK")
</pallas_src>

<mosaic_0001>
module attributes {stable_mosaic.version = 11 : i64} {
  func.func @kernel(%arg0: i32, %arg1: i32, %arg2: memref<16x128xf32, #tpu.memory_space<vmem>>, %arg3: memref<16x128xf32, #tpu.memory_space<vmem>>, %arg4: memref<16x128xf32, #tpu.memory_space<vmem>>, %arg5: memref<1x8x128xf32, #tpu.memory_space<vmem>>, %arg6: memref<1x8x128xf32, #tpu.memory_space<vmem>>, %arg7: memref<1x8x128xf32, #tpu.memory_space<vmem>>) attributes {dimension_semantics = [#tpu.dimension_semantics<parallel>, #tpu.dimension_semantics<arbitrary>], iteration_bounds = array<i64: 2, 1>, scalar_prefetch = 0 : i64, scratch_operands = 0 : i64, tpu.core_type = #tpu.core_type<tc>, window_params = [{transform_indices = @transform_0, window_bounds = array<i64: 16, 128>}, {transform_indices = @transform_1, window_bounds = array<i64: 16, 128>}, {transform_indices = @transform_2, window_bounds = array<i64: 16, 128>}, {transform_indices = @transform_3, window_bounds = array<i64: 1, 8, 128>}, {transform_indices = @transform_4, window_bounds = array<i64: 1, 8, 128>}, {transform_indices = @transform_5, window_bounds = array<i64: 1, 8, 128>}]} {
    %c0_i32 = arith.constant 0 : i32
    %0 = arith.cmpi eq, %arg1, %c0_i32 : i32
    %1 = arith.extui %0 : i1 to i32
    %c0_i32_0 = arith.constant 0 : i32
    %2 = arith.cmpi ne, %1, %c0_i32_0 : i32
    scf.if %2 {
      %cst_29 = arith.constant 0.000000e+00 : f32
      %46 = vector.broadcast %cst_29 : f32 to vector<1x8x128xf32>
      %c0_30 = arith.constant 0 : index
      %c0_31 = arith.constant 0 : index
      %c0_32 = arith.constant 0 : index
      %47 = vector.load %arg5[%c0_30, %c0_31, %c0_32] : memref<1x8x128xf32, #tpu.memory_space<vmem>>, vector<1x8x128xf32>
      tpu.vector_store %arg5[%c0_30, %c0_31, %c0_32], %46 {strides = array<i32>} : memref<1x8x128xf32, #tpu.memory_space<vmem>>, vector<1x8x128xf32>,
      %cst_33 = arith.constant 0.000000e+00 : f32
      %48 = vector.broadcast %cst_33 : f32 to vector<1x8x128xf32>
      %c0_34 = arith.constant 0 : index
      %c0_35 = arith.constant 0 : index
      %c0_36 = arith.constant 0 : index
      %49 = vector.load %arg6[%c0_34, %c0_35, %c0_36] : memref<1x8x128xf32, #tpu.memory_space<vmem>>, vector<1x8x128xf32>
      tpu.vector_store %arg6[%c0_34, %c0_35, %c0_36], %48 {strides = array<i32>} : memref<1x8x128xf32, #tpu.memory_space<vmem>>, vector<1x8x128xf32>,
      %cst_37 = arith.constant 0.000000e+00 : f32
      %50 = vector.broadcast %cst_37 : f32 to vector<1x8x128xf32>
      %c0_38 = arith.constant 0 : index
      %c0_39 = arith.constant 0 : index
      %c0_40 = arith.constant 0 : index
      %51 = vector.load %arg7[%c0_38, %c0_39, %c0_40] : memref<1x8x128xf32, #tpu.memory_space<vmem>>, vector<1x8x128xf32>
      tpu.vector_store %arg7[%c0_38, %c0_39, %c0_40], %50 {strides = array<i32>} : memref<1x8x128xf32, #tpu.memory_space<vmem>>, vector<1x8x128xf32>,
    } else {
    }
    %c0 = arith.constant 0 : index
    %c0_1 = arith.constant 0 : index
    %3 = vector.load %arg2[%c0, %c0_1] : memref<16x128xf32, #tpu.memory_space<vmem>>, vector<16x128xf32>
    %c0_2 = arith.constant 0 : index
    %c0_3 = arith.constant 0 : index
    %4 = vector.load %arg3[%c0_2, %c0_3] : memref<16x128xf32, #tpu.memory_space<vmem>>, vector<16x128xf32>
    %c0_4 = arith.constant 0 : index
    %c0_5 = arith.constant 0 : index
    %5 = vector.load %arg4[%c0_4, %c0_5] : memref<16x128xf32, #tpu.memory_space<vmem>>, vector<16x128xf32>
    %6 = arith.subf %3, %4 : vector<16x128xf32>
    %c1_i32 = arith.constant 1 : i32
    %7 = arith.muli %arg0, %c1_i32 : i32
    %8 = arith.addi %7, %arg1 : i32
    %c16_i32 = arith.constant 16 : i32
    %9 = arith.muli %8, %c16_i32 : i32
    %10 = tpu.iota {dimensions = array<i32: 0>} : vector<16x128xi32>
    %11 = vector.broadcast %9 : i32 to vector<16x128xi32>
    %12 = arith.addi %11, %10 : vector<16x128xi32>
    %c16_i32_6 = arith.constant 16 : i32
    %13 = vector.broadcast %c16_i32_6 : i32 to vector<16x128xi32>
    %14 = arith.cmpi slt, %12, %13 : vector<16x128xi32>
    %cst = arith.constant 0.000000e+00 : f32
    %15 = vector.broadcast %cst : f32 to vector<16x128xf32>
    %16 = arith.select %14, %6, %15 : vector<16x128xi1>, vector<16x128xf32>
    %cst_7 = arith.constant 0.000000e+00 : f32
    %17 = vector.broadcast %cst_7 : f32 to vector<16x128xf32>
    %18 = arith.select %14, %5, %17 : vector<16x128xi1>, vector<16x128xf32>
    %19 = arith.mulf %16, %18 : vector<16x128xf32>
    %c0_8 = arith.constant 0 : index
    %c0_9 = arith.constant 0 : index
    %c0_10 = arith.constant 0 : index
    %20 = vector.load %arg5[%c0_8, %c0_9, %c0_10] : memref<1x8x128xf32, #tpu.memory_space<vmem>>, vector<1x8x128xf32>
    %21 = vector.shape_cast %20 : vector<1x8x128xf32> to vector<8x128xf32>
    %22 = math.absf %19 : vector<16x128xf32>
    %23 = vector.shape_cast %22 : vector<16x128xf32> to vector<2x8x128xf32>
    %cst_11 = arith.constant dense<0.000000e+00> : vector<8x128xf32>
    %24 = vector.multi_reduction <add>, %23, %cst_11 [0] : vector<2x8x128xf32> to vector<8x128xf32>
    %25 = arith.addf %21, %24 : vector<8x128xf32>
    %c0_12 = arith.constant 0 : index
    %c0_13 = arith.constant 0 : index
    %c0_14 = arith.constant 0 : index
    %26 = vector.load %arg5[%c0_12, %c0_13, %c0_14] : memref<1x8x128xf32, #tpu.memory_space<vmem>>, vector<1x8x128xf32>
    %27 = vector.shape_cast %26 : vector<1x8x128xf32> to vector<8x128xf32>
    %28 = vector.shape_cast %25 : vector<8x128xf32> to vector<1x8x128xf32>
    tpu.vector_store %arg5[%c0_12, %c0_13, %c0_14], %28 {strides = array<i32>} : memref<1x8x128xf32, #tpu.memory_space<vmem>>, vector<1x8x128xf32>,
    %c0_15 = arith.constant 0 : index
    %c0_16 = arith.constant 0 : index
    %c0_17 = arith.constant 0 : index
    %29 = vector.load %arg6[%c0_15, %c0_16, %c0_17] : memref<1x8x128xf32, #tpu.memory_space<vmem>>, vector<1x8x128xf32>
    %30 = vector.shape_cast %29 : vector<1x8x128xf32> to vector<8x128xf32>
    %31 = arith.mulf %19, %16 : vector<16x128xf32>
    %32 = vector.shape_cast %31 : vector<16x128xf32> to vector<2x8x128xf32>
    %cst_18 = arith.constant dense<0.000000e+00> : vector<8x128xf32>
    %33 = vector.multi_reduction <add>, %32, %cst_18 [0] : vector<2x8x128xf32> to vector<8x128xf32>
    %34 = arith.addf %30, %33 : vector<8x128xf32>
    %c0_19 = arith.constant 0 : index
    %c0_20 = arith.constant 0 : index
    %c0_21 = arith.constant 0 : index
    %35 = vector.load %arg6[%c0_19, %c0_20, %c0_21] : memref<1x8x128xf32, #tpu.memory_space<vmem>>, vector<1x8x128xf32>
    %36 = vector.shape_cast %35 : vector<1x8x128xf32> to vector<8x128xf32>
    %37 = vector.shape_cast %34 : vector<8x128xf32> to vector<1x8x128xf32>
    tpu.vector_store %arg6[%c0_19, %c0_20, %c0_21], %37 {strides = array<i32>} : memref<1x8x128xf32, #tpu.memory_space<vmem>>, vector<1x8x128xf32>,
    %c0_22 = arith.constant 0 : index
    %c0_23 = arith.constant 0 : index
    %c0_24 = arith.constant 0 : index
    %38 = vector.load %arg7[%c0_22, %c0_23, %c0_24] : memref<1x8x128xf32, #tpu.memory_space<vmem>>, vector<1x8x128xf32>
    %39 = vector.shape_cast %38 : vector<1x8x128xf32> to vector<8x128xf32>
    %40 = vector.shape_cast %18 : vector<16x128xf32> to vector<2x8x128xf32>
    %cst_25 = arith.constant dense<0.000000e+00> : vector<8x128xf32>
    %41 = vector.multi_reduction <add>, %40, %cst_25 [0] : vector<2x8x128xf32> to vector<8x128xf32>
    %42 = arith.addf %39, %41 : vector<8x128xf32>
    %c0_26 = arith.constant 0 : index
    %c0_27 = arith.constant 0 : index
    %c0_28 = arith.constant 0 : index
    %43 = vector.load %arg7[%c0_26, %c0_27, %c0_28] : memref<1x8x128xf32, #tpu.memory_space<vmem>>, vector<1x8x128xf32>
    %44 = vector.shape_cast %43 : vector<1x8x128xf32> to vector<8x128xf32>
    %45 = vector.shape_cast %42 : vector<8x128xf32> to vector<1x8x128xf32>
    tpu.vector_store %arg7[%c0_26, %c0_27, %c0_28], %45 {strides = array<i32>} : memref<1x8x128xf32, #tpu.memory_space<vmem>>, vector<1x8x128xf32>,
    return
  }
  func.func @transform_0(%arg0: i32, %arg1: i32) -> (i32, i32) {
    %c1_i32 = arith.constant 1 : i32
    %0 = arith.muli %arg0, %c1_i32 : i32
    %1 = arith.addi %0, %arg1 : i32
    %c0_i32 = arith.constant 0 : i32
    %2 = arith.minsi %1, %c0_i32 : i32
    %c0_i32_0 = arith.constant 0 : i32
    %c0_i32_1 = arith.constant 0 : i32
    return %2, %c0_i32_0 : i32, i32
  }
  func.func @transform_1(%arg0: i32, %arg1: i32) -> (i32, i32) {
    %c1_i32 = arith.constant 1 : i32
    %0 = arith.muli %arg0, %c1_i32 : i32
    %1 = arith.addi %0, %arg1 : i32
    %c0_i32 = arith.constant 0 : i32
    %2 = arith.minsi %1, %c0_i32 : i32
    %c0_i32_0 = arith.constant 0 : i32
    %c0_i32_1 = arith.constant 0 : i32
    return %2, %c0_i32_0 : i32, i32
  }
  func.func @transform_2(%arg0: i32, %arg1: i32) -> (i32, i32) {
    %c1_i32 = arith.constant 1 : i32
    %0 = arith.muli %arg0, %c1_i32 : i32
    %1 = arith.addi %0, %arg1 : i32
    %c0_i32 = arith.constant 0 : i32
    %2 = arith.minsi %1, %c0_i32 : i32
    %c0_i32_0 = arith.constant 0 : i32
    %c0_i32_1 = arith.constant 0 : i32
    return %2, %c0_i32_0 : i32, i32
  }
  func.func @transform_3(%arg0: i32, %arg1: i32) -> (i32, i32, i32) {
    %c0_i32 = arith.constant 0 : i32
    %c0_i32_0 = arith.constant 0 : i32
    %c0_i32_1 = arith.constant 0 : i32
    return %arg0, %c0_i32, %c0_i32_0 : i32, i32, i32
  }
  func.func @transform_4(%arg0: i32, %arg1: i32) -> (i32, i32, i32) {
    %c0_i32 = arith.constant 0 : i32
    %c0_i32_0 = arith.constant 0 : i32
    %c0_i32_1 = arith.constant 0 : i32
    return %arg0, %c0_i32, %c0_i32_0 : i32, i32, i32
  }
  func.func @transform_5(%arg0: i32, %arg1: i32) -> (i32, i32, i32) {
    %c0_i32 = arith.constant 0 : i32
    %c0_i32_0 = arith.constant 0 : i32
    %c0_i32_1 = arith.constant 0 : i32
    return %arg0, %c0_i32, %c0_i32_0 : i32, i32, i32
  }
}

</mosaic_0001>

<llo_original>
// kernel: tpu_custom_call.1
$region0: #{tpu_custom_call.1}
  #allocation0 [shape = 'u32[]', space=smem, size = 0x4, offset = 0x4, fixed_abs, tag = 'smem constant byte address 0x4 - core index']
  #allocation1 [shape = 'u32[144,128]{1,0:T(1,128)}', space=vmem, size = 0x12000, scoped, tag = 'internal scratch']
  %s0 = inlined_call_operand.hbm [shape: f32[16,128], index: 0, kind: input, shape index: {}]
  %s1 = inlined_call_operand.hbm [shape: f32[16,128], index: 1, kind: input, shape index: {}]
  %s2 = inlined_call_operand.hbm [shape: f32[16,128], index: 2, kind: input, shape index: {}]
  %s3 = inlined_call_operand.hbm [shape: f32[2,8,128], index: 3, kind: output, shape index: {0}]
  %s4 = inlined_call_operand.hbm [shape: f32[2,8,128], index: 4, kind: output, shape index: {1}]
  %s5 = inlined_call_operand.hbm [shape: f32[2,8,128], index: 5, kind: output, shape index: {2}]
  %6 = xla_tuple %s3, %s4, %s5
  %s7 = sld [smem:[#allocation0]]
  $region77: #{tpu_custom_call.1} parent=0
    _
  %s9 = ssub.s32 1, %s7
  %s10 = scalar_select 0, %s9, %s7
  $region1: #{tpu_custom_call.1} parent=0
    #allocation2 [shape = 'u8[16384]{0}', space=vmem, size = 0x4000, scoped, tag = 'input window, operand 0']
    #allocation3 [shape = 's32[2]{0}', space=sflag, size = 0x8, scoped, tag = 'scoped memory for tpu_custom_call.1']
    #allocation4 [shape = 's32[2]{0}', space=sflag, size = 0x8, scoped, tag = 'scoped memory for tpu_custom_call.1']
    #allocation5 [shape = 'u8[16384]{0}', space=vmem, size = 0x4000, scoped, tag = 'input window, operand 1']
    #allocation6 [shape = 's32[2]{0}', space=sflag, size = 0x8, scoped, tag = 'scoped memory for tpu_custom_call.1']
    #allocation7 [shape = 'u8[16384]{0}', space=vmem, size = 0x4000, scoped, tag = 'input window, operand 2']
    #allocation8 [shape = 'u8[8192]{0}', space=vmem, size = 0x2000, scoped, tag = 'output window, operand 0']
    #allocation9 [shape = 'u8[8192]{0}', space=vmem, size = 0x2000, scoped, tag = 'output window, operand 1']
    #allocation10 [shape = 's32[2]{0}', space=sflag, size = 0x8, scoped, tag = 'scoped memory for tpu_custom_call.1']
    #allocation11 [shape = 'u8[8192]{0}', space=vmem, size = 0x2000, scoped, tag = 'output window, operand 2']
    %11 = vsyncpa [#allocation3], 0
    %s12 = scalar_lea.sflag [#allocation3], 1
    %13 = vsyncpa %s12, 0
    %14 = vsyncpa [#allocation6], 0
    %s15 = scalar_lea.sflag [#allocation6], 1
    %16 = vsyncpa %s15, 0
    %17 = vsyncpa [#allocation4], 0
    %s18 = scalar_lea.sflag [#allocation4], 1
    %19 = vsyncpa %s18, 0
    %20 = vsyncpa [#allocation10], 0
    %s21 = scalar_lea.sflag [#allocation10], 1
    %22 = vsyncpa %s21, 0
    loop: start=0, step=1, limit=4
    $region2: #{tpu_custom_call.1} parent=1 // loop_pre_header
      _
    $region3: #{tpu_custom_call.1} parent=1 // loop_header
      %s24 = sphi 0, %s28
      %p25 = scmp.ge.s32.totalorder %s24, 4
      %s31 = sphi 0, %s43
      %s32 = sphi 0, %s39
      %s33 = sphi 0, %s31
      %s34 = sphi 0, %s32
      %s35 = sphi 0, %s33
      %s36 = sphi 0, %s34
      %s52 = sphi 0, %s54
      %s55 = sphi 0, %s52
      %s56 = sphi 0, %s55
      %s72 = sphi 0, %s56
      %s84 = sphi 0, %s86
      %s87 = sphi 0, %s84
      %s88 = sphi 0, %s87
      %s104 = sphi 0, %s88
      %s116 = sphi 0, %s118
      %s119 = sphi 0, %s116
      %s120 = sphi 0, %s119
      %s136 = sphi 0, %s120
      %s142 = sphi 0, %s144
      %s145 = sphi 0, %s142
      %s146 = sphi 0, %s145
      %s162 = sphi 0, %s146
      %s168 = sphi 0, %s170
      %s171 = sphi 0, %s168
      %s172 = sphi 0, %s171
      %s188 = sphi 0, %s172
      %s194 = sphi 0, %s196
      %s197 = sphi 0, %s194
      %s198 = sphi 0, %s197
      %s214 = sphi 0, %s198
    $region4: #{tpu_custom_call.1} parent=1 // loop_header_branch
      %27 = sbr.rel (%p25) target = $region8
    $region5: #{tpu_custom_call.1} parent=1 // loop_body
      %s29 = ssub.s32 %s24, 1
      %s30 = ssub.s32 %s24, 2
      %s37 = sadd.s32 1, %s32
      %p38 = scmp.ge.s32.totalorder %s37, 1
      %s39 = scalar_select %p38, 0, %s37
      %s40 = sadd.s32 1, %s31
      %s41 = scalar_select %p38, %s40, %s31
      %p42 = scmp.ge.s32.totalorder %s41, 2
      %s43 = scalar_select %p42, 0, %s41
      %s44 = sadd.s32 %s31, %s32
      %p45 = scmp.lt.s32.totalorder %s44, 0
      %s46 = scalar_select %p45, %s44, 0
      %s47 = sadd.s32 %s43, %s39
      %p48 = scmp.lt.s32.totalorder %s47, 0
      %s49 = scalar_select %p48, %s47, 0
      %s50 = ssub.s32 %s46, %s49
      %p51 = scmp.eq.s32.totalorder %s50, 0
      %s53 = sadd.s32 %s52, 1
      %s54 = scalar_select %p51, %s52, %s53
      %p57 = pneg %p51
      %p58 = scmp.eq.s32.totalorder %s24, 1
      %p59 = por %p57, %p58
      %p60 = scmp.ne.s32.totalorder %s52, %s55
      %p61 = scmp.eq.s32.totalorder %s24, 0
      %p62 = por %p60, %p61
      %p63 = scmp.ne.s32.totalorder %s52, %s55
      %p64 = scmp.eq.s32.totalorder %s29, 1
      %p65 = por %p63, %p64
      %p66 = scmp.ne.s32.totalorder %s55, %s56
      %p67 = scmp.eq.s32.totalorder %s29, 0
      %p68 = por %p66, %p67
      %p69 = scmp.ne.s32.totalorder %s55, %s56
      %p70 = scmp.eq.s32.totalorder %s30, 1
      %p71 = por %p69, %p70
      %p73 = scmp.ne.s32.totalorder %s56, %s72
      %p74 = scmp.eq.s32.totalorder %s30, 0
      %p75 = por %p73, %p74
      %s76 = sadd.s32 %s31, %s32
      %p77 = scmp.lt.s32.totalorder %s76, 0
      %s78 = scalar_select %p77, %s76, 0
      %s79 = sadd.s32 %s43, %s39
      %p80 = scmp.lt.s32.totalorder %s79, 0
      %s81 = scalar_select %p80, %s79, 0
      %s82 = ssub.s32 %s78, %s81
      %p83 = scmp.eq.s32.totalorder %s82, 0
      %s85 = sadd.s32 %s84, 1
      %s86 = scalar_select %p83, %s84, %s85
      %p89 = pneg %p83
      %p90 = scmp.eq.s32.totalorder %s24, 1
      %p91 = por %p89, %p90
      %p92 = scmp.ne.s32.totalorder %s84, %s87
      %p93 = scmp.eq.s32.totalorder %s24, 0
      %p94 = por %p92, %p93
      %p95 = scmp.ne.s32.totalorder %s84, %s87
      %p96 = scmp.eq.s32.totalorder %s29, 1
      %p97 = por %p95, %p96
      %p98 = scmp.ne.s32.totalorder %s87, %s88
      %p99 = scmp.eq.s32.totalorder %s29, 0
      %p100 = por %p98, %p99
      %p101 = scmp.ne.s32.totalorder %s87, %s88
      %p102 = scmp.eq.s32.totalorder %s30, 1
      %p103 = por %p101, %p102
      %p105 = scmp.ne.s32.totalorder %s88, %s104
      %p106 = scmp.eq.s32.totalorder %s30, 0
      %p107 = por %p105, %p106
      %s108 = sadd.s32 %s31, %s32
      %p109 = scmp.lt.s32.totalorder %s108, 0
      %s110 = scalar_select %p109, %s108, 0
      %s111 = sadd.s32 %s43, %s39
      %p112 = scmp.lt.s32.totalorder %s111, 0
      %s113 = scalar_select %p112, %s111, 0
      %s114 = ssub.s32 %s110, %s113
      %p115 = scmp.eq.s32.totalorder %s114, 0
      %s117 = sadd.s32 %s116, 1
      %s118 = scalar_select %p115, %s116, %s117
      %p121 = pneg %p115
      %p122 = scmp.eq.s32.totalorder %s24, 1
      %p123 = por %p121, %p122
      %p124 = scmp.ne.s32.totalorder %s116, %s119
      %p125 = scmp.eq.s32.totalorder %s24, 0
      %p126 = por %p124, %p125
      %p127 = scmp.ne.s32.totalorder %s116, %s119
      %p128 = scmp.eq.s32.totalorder %s29, 1
      %p129 = por %p127, %p128
      %p130 = scmp.ne.s32.totalorder %s119, %s120
      %p131 = scmp.eq.s32.totalorder %s29, 0
      %p132 = por %p130, %p131
      %p133 = scmp.ne.s32.totalorder %s119, %s120
      %p134 = scmp.eq.s32.totalorder %s30, 1
      %p135 = por %p133, %p134
      %p137 = scmp.ne.s32.totalorder %s120, %s136
      %p138 = scmp.eq.s32.totalorder %s30, 0
      %p139 = por %p137, %p138
      %s140 = ssub.s32 %s31, %s43
      %p141 = scmp.eq.s32.totalorder %s140, 0
      %s143 = sadd.s32 %s142, 1
      %s144 = scalar_select %p141, %s142, %s143
      %p147 = pneg %p141
      %p148 = scmp.eq.s32.totalorder %s24, 1
      %p149 = por %p147, %p148
      %p150 = scmp.ne.s32.totalorder %s142, %s145
      %p151 = scmp.eq.s32.totalorder %s24, 0
      %p152 = por %p150, %p151
      %p153 = scmp.ne.s32.totalorder %s142, %s145
      %p154 = scmp.eq.s32.totalorder %s29, 1
      %p155 = por %p153, %p154
      %p156 = scmp.ne.s32.totalorder %s145, %s146
      %p157 = scmp.eq.s32.totalorder %s29, 0
      %p158 = por %p156, %p157
      %p159 = scmp.ne.s32.totalorder %s145, %s146
      %p160 = scmp.eq.s32.totalorder %s30, 1
      %p161 = por %p159, %p160
      %p163 = scmp.ne.s32.totalorder %s146, %s162
      %p164 = scmp.eq.s32.totalorder %s30, 0
      %p165 = por %p163, %p164
      %s166 = ssub.s32 %s31, %s43
      %p167 = scmp.eq.s32.totalorder %s166, 0
      %s169 = sadd.s32 %s168, 1
      %s170 = scalar_select %p167, %s168, %s169
      %p173 = pneg %p167
      %p174 = scmp.eq.s32.totalorder %s24, 1
      %p175 = por %p173, %p174
      %p176 = scmp.ne.s32.totalorder %s168, %s171
      %p177 = scmp.eq.s32.totalorder %s24, 0
      %p178 = por %p176, %p177
      %p179 = scmp.ne.s32.totalorder %s168, %s171
      %p180 = scmp.eq.s32.totalorder %s29, 1
      %p181 = por %p179, %p180
      %p182 = scmp.ne.s32.totalorder %s171, %s172
      %p183 = scmp.eq.s32.totalorder %s29, 0
      %p184 = por %p182, %p183
      %p185 = scmp.ne.s32.totalorder %s171, %s172
      %p186 = scmp.eq.s32.totalorder %s30, 1
      %p187 = por %p185, %p186
      %p189 = scmp.ne.s32.totalorder %s172, %s188
      %p190 = scmp.eq.s32.totalorder %s30, 0
      %p191 = por %p189, %p190
      %s192 = ssub.s32 %s31, %s43
      %p193 = scmp.eq.s32.totalorder %s192, 0
      %s195 = sadd.s32 %s194, 1
      %s196 = scalar_select %p193, %s194, %s195
      %p199 = pneg %p193
      %p200 = scmp.eq.s32.totalorder %s24, 1
      %p201 = por %p199, %p200
      %p202 = scmp.ne.s32.totalorder %s194, %s197
      %p203 = scmp.eq.s32.totalorder %s24, 0
      %p204 = por %p202, %p203
      %p205 = scmp.ne.s32.totalorder %s194, %s197
      %p206 = scmp.eq.s32.totalorder %s29, 1
      %p207 = por %p205, %p206
      %p208 = scmp.ne.s32.totalorder %s197, %s198
      %p209 = scmp.eq.s32.totalorder %s29, 0
      %p210 = por %p208, %p209
      %p211 = scmp.ne.s32.totalorder %s197, %s198
      %p212 = scmp.eq.s32.totalorder %s30, 1
      %p213 = por %p211, %p212
      %p215 = scmp.ne.s32.totalorder %s198, %s214
      %p216 = scmp.eq.s32.totalorder %s30, 0
      %p217 = por %p215, %p216
      %p218 = scmp.le.s32.totalorder 1, %s24
      %p219 = scmp.lt.s32.totalorder %s24, 3
      %p220 = pnand %p218, %p219
      %p221 = pneg %p220
      // Predicated region
      $region9: #{tpu_custom_call.1} parent=5 // pred_check
        _
      $region10: #{tpu_custom_call.1} parent=5 // pred_check_branch
        %223 = sbr.rel (%p220) target = $region12
      $region11: #{tpu_custom_call.1} parent=5 // pred_region
        %s224 = ssub.s32 %s24, 1
      $region12: #{tpu_custom_call.1} parent=5 // pred_fallthru
        _
      %p225 = scmp.lt.s32.totalorder %s24, 2
      // Predicated region
      $region13: #{tpu_custom_call.1} parent=5 // pred_check
        %p226 = pneg %p225
      $region14: #{tpu_custom_call.1} parent=5 // pred_check_branch
        %228 = sbr.rel (%p226) target = $region16
      $region15: #{tpu_custom_call.1} parent=5 // pred_region
        // Predicated region
        $region17: #{tpu_custom_call.1} parent=15 // pred_check
          %p229 = pneg %p62
        $region18: #{tpu_custom_call.1} parent=15 // pred_check_branch
          %231 = sbr.rel (%p229) target = $region20
        $region19: #{tpu_custom_call.1} parent=15 // pred_region
          %s232 = sand.u32 %s52, 1
          %s233 = scalar_lea.sflag [#allocation3], %s232
          %s234 = sand.u32 %s52, 1
          %s235 = smul.addr %s234, 16
          %s236 = scalar_lea.vmem [#allocation2], %s235
          %s237 = sadd.s32 %s31, %s32
          %p238 = scmp.lt.s32.totalorder %s237, 0
          %s239 = scalar_select %p238, %s237, 0
          %s240 = smul.u32 2, %s239
          %s242 = ssub.s32 256, 256
          %243 = vsyncadd %s233, %s242
          %s244 = smul.addr %s240, 128
          %s245 = scalar_lea.hbm %s0, %s244
          %s246 = sshll.u32 %s236, 4
          %s247 = int_to_ptr.vmem [resolvable:$true] %s246
          %252 = dma.hbm_to_vmem [thread:$0]  %s245, 256, %s247, %s233, 128, 128, 8
        $region20: #{tpu_custom_call.1} parent=15 // pred_fallthru
          _
        // Predicated region
        $region21: #{tpu_custom_call.1} parent=15 // pred_check
          %p253 = pneg %p94
        $region22: #{tpu_custom_call.1} parent=15 // pred_check_branch
          %255 = sbr.rel (%p253) target = $region24
        $region23: #{tpu_custom_call.1} parent=15 // pred_region
          %s256 = sand.u32 %s24, 1
          %s257 = scalar_lea.sflag [#allocation6], %s256
          %s258 = sand.u32 %s84, 1
          %s259 = smul.addr %s258, 16
          %s260 = scalar_lea.vmem [#allocation5], %s259
          %s261 = sadd.s32 %s31, %s32
          %p262 = scmp.lt.s32.totalorder %s261, 0
          %s263 = scalar_select %p262, %s261, 0
          %s264 = smul.u32 2, %s263
          %s266 = ssub.s32 256, 256
          %267 = vsyncadd %s257, %s266
          %s268 = smul.addr %s264, 128
          %s269 = scalar_lea.hbm %s1, %s268
          %s270 = sshll.u32 %s260, 4
          %s271 = int_to_ptr.vmem [resolvable:$true] %s270
          %276 = dma.hbm_to_vmem [thread:$0]  %s269, 256, %s271, %s257, 128, 128, 8
        $region24: #{tpu_custom_call.1} parent=15 // pred_fallthru
          _
        // Predicated region
        $region25: #{tpu_custom_call.1} parent=15 // pred_check
          %p277 = pneg %p126
        $region26: #{tpu_custom_call.1} parent=15 // pred_check_branch
          %279 = sbr.rel (%p277) target = $region28
        $region27: #{tpu_custom_call.1} parent=15 // pred_region
          %s280 = sand.u32 %s24, 1
          %s281 = scalar_lea.sflag [#allocation6], %s280
          %s282 = sand.u32 %s116, 1
          %s283 = smul.addr %s282, 16
          %s284 = scalar_lea.vmem [#allocation7], %s283
          %s285 = sadd.s32 %s31, %s32
          %p286 = scmp.lt.s32.totalorder %s285, 0
          %s287 = scalar_select %p286, %s285, 0
          %s288 = smul.u32 2, %s287
          %s290 = ssub.s32 256, 256
          %291 = vsyncadd %s281, %s290
          %s292 = smul.addr %s288, 128
          %s293 = scalar_lea.hbm %s2, %s292
          %s294 = sshll.u32 %s284, 4
          %s295 = int_to_ptr.vmem [resolvable:$true] %s294
          %300 = dma.hbm_to_vmem [thread:$0]  %s293, 256, %s295, %s281, 128, 128, 8
        $region28: #{tpu_custom_call.1} parent=15 // pred_fallthru
          _
      $region16: #{tpu_custom_call.1} parent=5 // pred_fallthru
        _
      %p301 = scmp.le.s32.totalorder 1, %s24
      %p302 = scmp.lt.s32.totalorder %s24, 3
      %p303 = pnand %p301, %p302
      %p304 = pneg %p303
      // Predicated region
      $region29: #{tpu_custom_call.1} parent=5 // pred_check
        _
      $region30: #{tpu_custom_call.1} parent=5 // pred_check_branch
        %306 = sbr.rel (%p303) target = $region32
      $region31: #{tpu_custom_call.1} parent=5 // pred_region
        %s307 = ssub.s32 %s24, 1
        %s308 = sand.u32 %s55, 1
        %s309 = scalar_lea.sflag [#allocation3], %s308
        %s310 = sand.u32 %s55, 1
        %s311 = smul.addr %s310, 16
        %s312 = scalar_lea.vmem [#allocation2], %s311
        // Predicated region
        $region33: #{tpu_custom_call.1} parent=31 // pred_check
          %p313 = pneg %p68
        $region34: #{tpu_custom_call.1} parent=31 // pred_check_branch
          %315 = sbr.rel (%p313) target = $region36
        $region35: #{tpu_custom_call.1} parent=31 // pred_region
          %316 = dma.done %s309, 256
        $region36: #{tpu_custom_call.1} parent=31 // pred_fallthru
          _
        %s317 = sand.u32 %s29, 1
        %s318 = scalar_lea.sflag [#allocation6], %s317
        %s319 = sand.u32 %s87, 1
        %s320 = smul.addr %s319, 16
        %s321 = scalar_lea.vmem [#allocation5], %s320
        // Predicated region
        $region37: #{tpu_custom_call.1} parent=31 // pred_check
          %p322 = pneg %p100
        $region38: #{tpu_custom_call.1} parent=31 // pred_check_branch
          %324 = sbr.rel (%p322) target = $region40
        $region39: #{tpu_custom_call.1} parent=31 // pred_region
          %325 = dma.done %s318, 256
        $region40: #{tpu_custom_call.1} parent=31 // pred_fallthru
          _
        %s326 = sand.u32 %s29, 1
        %s327 = scalar_lea.sflag [#allocation6], %s326
        %s328 = sand.u32 %s119, 1
        %s329 = smul.addr %s328, 16
        %s330 = scalar_lea.vmem [#allocation7], %s329
        // Predicated region
        $region41: #{tpu_custom_call.1} parent=31 // pred_check
          %p331 = pneg %p132
        $region42: #{tpu_custom_call.1} parent=31 // pred_check_branch
          %333 = sbr.rel (%p331) target = $region44
        $region43: #{tpu_custom_call.1} parent=31 // pred_region
          %334 = dma.done %s327, 256
        $region44: #{tpu_custom_call.1} parent=31 // pred_fallthru
          _
        %s335 = sand.u32 %s55, 1
        %s336 = scalar_lea.sflag [#allocation3], %s335
        %s337 = sand.u32 %s55, 1
        %s338 = smul.addr %s337, 16
        %s339 = scalar_lea.vmem [#allocation2], %s338
        %p340 = pneg %p68
        %p341 = pneg %p65
        %s342 = sand.u32 %s29, 1
        %s343 = scalar_lea.sflag [#allocation6], %s342
        %s344 = sand.u32 %s87, 1
        %s345 = smul.addr %s344, 16
        %s346 = scalar_lea.vmem [#allocation5], %s345
        %p347 = pneg %p100
        %p348 = pneg %p97
        %s349 = sand.u32 %s29, 1
        %s350 = scalar_lea.sflag [#allocation6], %s349
        %s351 = sand.u32 %s119, 1
        %s352 = smul.addr %s351, 16
        %s353 = scalar_lea.vmem [#allocation7], %s352
        %p354 = pneg %p132
        %p355 = pneg %p129
        %p356 = pneg %p158
        %p357 = pneg %p155
        %s358 = sand.u32 %s145, 1
        %s359 = scalar_lea.sflag [#allocation4], %s358
        %s360 = sand.u32 %s145, 1
        %s361 = smul.addr %s360, 8
        %s362 = scalar_lea.vmem [#allocation8], %s361
        %p363 = pneg %p184
        %p364 = pneg %p181
        %s365 = sand.u32 %s29, 1
        %s366 = scalar_lea.sflag [#allocation10], %s365
        %s367 = sand.u32 %s171, 1
        %s368 = smul.addr %s367, 8
        %s369 = scalar_lea.vmem [#allocation9], %s368
        %p370 = pneg %p210
        %p371 = pneg %p207
        %s372 = sand.u32 %s29, 1
        %s373 = scalar_lea.sflag [#allocation10], %s372
        %s374 = sand.u32 %s197, 1
        %s375 = smul.addr %s374, 8
        %s376 = scalar_lea.vmem [#allocation11], %s375
        %s377 = sadd.s32 %s33, %s34
        %p378 = scmp.lt.s32.totalorder %s377, 0
        %s379 = scalar_select %p378, %s377, 0
        %s380 = smul.u32 2, %s379
        %s381 = sadd.s32 %s33, %s34
        %p382 = scmp.lt.s32.totalorder %s381, 0
        %s383 = scalar_select %p382, %s381, 0
        %s384 = smul.u32 2, %s383
        %s385 = sadd.s32 %s33, %s34
        %p386 = scmp.lt.s32.totalorder %s385, 0
        %s387 = scalar_select %p386, %s385, 0
        %s388 = smul.u32 2, %s387
        %p389 = scmp.eq.s32.totalorder %s34, 0
        // Predicated region
        $region45: #{tpu_custom_call.1} parent=31 // pred_check
          %p390 = pneg %p389
        $region46: #{tpu_custom_call.1} parent=31 // pred_check_branch
          %392 = sbr.rel (%p390) target = $region48
        $region47: #{tpu_custom_call.1} parent=31 // pred_region
          %393 = vst [vmem:[%s362] sm:$0xff] 0.0
          %394 = vst [vmem:[%s369] sm:$0xff] 0.0
          %395 = vst [vmem:[%s376] sm:$0xff] 0.0
        $region48: #{tpu_custom_call.1} parent=31 // pred_fallthru
          _
        %v396 = vld [vmem:[%s312] sm:$0xff]
        %v397 = vld [vmem:[%s312 + $0x8] sm:$0xff]
        %v398 = vld [vmem:[%s321] sm:$0xff]
        %v399 = vld [vmem:[%s321 + $0x8] sm:$0xff]
        %v400 = vld [vmem:[%s330] sm:$0xff]
        %v401 = vld [vmem:[%s330 + $0x8] sm:$0xff]
        %v402 = vsub.f32 %v396, %v398
        %v403 = vsub.f32 %v397, %v399
        %s404 = sadd.s32 %s33, %s34
        %s405 = smul.u32 %s404, 16
        %v406 = vlaneseq
        %v407 = vshrl.u32 %v406, 7
        %v408 = vadd.s32 %v407, 8
        %v409 = vstv %s405
        %v410 = vadd.s32 %v409, %v407
        %v411 = vadd.s32 %v409, %v408
        %vm412 = vcmp.lt.s32.totalorder %v410, 16
        %vm413 = vcmp.lt.s32.totalorder %v411, 16
        %v414 = vsel %vm412, %v402, 0.0
        %v415 = vsel %vm413, %v403, 0.0
        %v416 = vsel %vm412, %v400, 0.0
        %v417 = vsel %vm413, %v401, 0.0
        %v418 = vmul.f32 %v414, %v416
        %v419 = vmul.f32 %v415, %v417
        %v420 = vld [vmem:[%s362] sm:$0xff]
        %v421 = vand.u32 2147483647, %v418
        %v422 = vand.u32 2147483647, %v419
        %v423 = vadd.f32 %v421, %v422
        %v424 = vadd.f32 %v420, %v423
        %425 = vst [vmem:[%s362] sm:$0xff] %v424
        %v426 = vld [vmem:[%s369] sm:$0xff]
        %v427 = vmul.f32 %v418, %v414
        %v428 = vmul.f32 %v419, %v415
        %v429 = vadd.f32 %v427, %v428
        %v430 = vadd.f32 %v426, %v429
        %431 = vst [vmem:[%s369] sm:$0xff] %v430
        %v432 = vld [vmem:[%s376] sm:$0xff]
        %v433 = vadd.f32 %v416, %v417
        %v434 = vadd.f32 %v432, %v433
        %435 = vst [vmem:[%s376] sm:$0xff] %v434
        %s436 = sand.u32 %s145, 1
        %s437 = scalar_lea.sflag [#allocation4], %s436
        %s438 = sand.u32 %s145, 1
        %s439 = smul.addr %s438, 8
        %s440 = scalar_lea.vmem [#allocation8], %s439
        %s441 = sand.u32 %s29, 1
        %s442 = scalar_lea.sflag [#allocation10], %s441
        %s443 = sand.u32 %s171, 1
        %s444 = smul.addr %s443, 8
        %s445 = scalar_lea.vmem [#allocation9], %s444
        %s446 = sand.u32 %s29, 1
        %s447 = scalar_lea.sflag [#allocation10], %s446
        %s448 = sand.u32 %s197, 1
        %s449 = smul.addr %s448, 8
        %s450 = scalar_lea.vmem [#allocation11], %s449
        // Predicated region
        $region49: #{tpu_custom_call.1} parent=31 // pred_check
          %p451 = pneg %p155
        $region50: #{tpu_custom_call.1} parent=31 // pred_check_branch
          %453 = sbr.rel (%p451) target = $region52
        $region51: #{tpu_custom_call.1} parent=31 // pred_region
          %s455 = ssub.s32 128, 128
          %456 = vsyncadd %s437, %s455
          %s457 = smul.addr %s33, 128
          %s458 = scalar_lea.hbm %s3, %s457
          %s460 = sshll.u32 %s440, 4
          %s461 = int_to_ptr.vmem [resolvable:$true] %s460
          %463 = dma.vmem_to_hbm [thread:$0]  %s461, 128, %s458, %s437
        $region52: #{tpu_custom_call.1} parent=31 // pred_fallthru
          _
        // Predicated region
        $region53: #{tpu_custom_call.1} parent=31 // pred_check
          %p464 = pneg %p181
        $region54: #{tpu_custom_call.1} parent=31 // pred_check_branch
          %466 = sbr.rel (%p464) target = $region56
        $region55: #{tpu_custom_call.1} parent=31 // pred_region
          %s468 = ssub.s32 128, 128
          %469 = vsyncadd %s442, %s468
          %s470 = smul.addr %s33, 128
          %s471 = scalar_lea.hbm %s4, %s470
          %s473 = sshll.u32 %s445, 4
          %s474 = int_to_ptr.vmem [resolvable:$true] %s473
          %476 = dma.vmem_to_hbm [thread:$0]  %s474, 128, %s471, %s442
        $region56: #{tpu_custom_call.1} parent=31 // pred_fallthru
          _
        // Predicated region
        $region57: #{tpu_custom_call.1} parent=31 // pred_check
          %p477 = pneg %p207
        $region58: #{tpu_custom_call.1} parent=31 // pred_check_branch
          %479 = sbr.rel (%p477) target = $region60
        $region59: #{tpu_custom_call.1} parent=31 // pred_region
          %s481 = ssub.s32 128, 128
          %482 = vsyncadd %s447, %s481
          %s483 = smul.addr %s33, 128
          %s484 = scalar_lea.hbm %s5, %s483
          %s486 = sshll.u32 %s450, 4
          %s487 = int_to_ptr.vmem [resolvable:$true] %s486
          %489 = dma.vmem_to_hbm [thread:$0]  %s487, 128, %s484, %s447
        $region60: #{tpu_custom_call.1} parent=31 // pred_fallthru
          _
      $region32: #{tpu_custom_call.1} parent=5 // pred_fallthru
        _
      %p490 = scmp.le.s32.totalorder 2, %s24
      // Predicated region
      $region61: #{tpu_custom_call.1} parent=5 // pred_check
        %p491 = pneg %p490
      $region62: #{tpu_custom_call.1} parent=5 // pred_check_branch
        %493 = sbr.rel (%p491) target = $region64
      $region63: #{tpu_custom_call.1} parent=5 // pred_region
        %s494 = ssub.s32 %s24, 2
        // Predicated region
        $region65: #{tpu_custom_call.1} parent=63 // pred_check
          %p495 = pneg %p161
        $region66: #{tpu_custom_call.1} parent=63 // pred_check_branch
          %497 = sbr.rel (%p495) target = $region68
        $region67: #{tpu_custom_call.1} parent=63 // pred_region
          %s498 = sand.u32 %s146, 1
          %s499 = scalar_lea.sflag [#allocation4], %s498
          %s500 = sand.u32 %s146, 1
          %s501 = smul.addr %s500, 8
          %s502 = scalar_lea.vmem [#allocation8], %s501
          %503 = dma.done %s499, 128
        $region68: #{tpu_custom_call.1} parent=63 // pred_fallthru
          _
        // Predicated region
        $region69: #{tpu_custom_call.1} parent=63 // pred_check
          %p504 = pneg %p187
        $region70: #{tpu_custom_call.1} parent=63 // pred_check_branch
          %506 = sbr.rel (%p504) target = $region72
        $region71: #{tpu_custom_call.1} parent=63 // pred_region
          %s507 = sand.u32 %s30, 1
          %s508 = scalar_lea.sflag [#allocation10], %s507
          %s509 = sand.u32 %s172, 1
          %s510 = smul.addr %s509, 8
          %s511 = scalar_lea.vmem [#allocation9], %s510
          %512 = dma.done %s508, 128
        $region72: #{tpu_custom_call.1} parent=63 // pred_fallthru
          _
        // Predicated region
        $region73: #{tpu_custom_call.1} parent=63 // pred_check
          %p513 = pneg %p213
        $region74: #{tpu_custom_call.1} parent=63 // pred_check_branch
          %515 = sbr.rel (%p513) target = $region76
        $region75: #{tpu_custom_call.1} parent=63 // pred_region
          %s516 = sand.u32 %s30, 1
          %s517 = scalar_lea.sflag [#allocation10], %s516
          %s518 = sand.u32 %s198, 1
          %s519 = smul.addr %s518, 8
          %s520 = scalar_lea.vmem [#allocation11], %s519
          %521 = dma.done %s517, 128
        $region76: #{tpu_custom_call.1} parent=63 // pred_fallthru
          _
      $region64: #{tpu_custom_call.1} parent=5 // pred_fallthru
        _
    $region6: #{tpu_custom_call.1} parent=1 // loop_footer
      %s28 = sadd.s32 1, %s24
    $region7: #{tpu_custom_call.1} parent=1 // loop_footer_branch
      %23 = sbr.rel target = $region3
    $region8: #{tpu_custom_call.1} parent=1 // loop_exit
      _
    %522 = vsyncpa [#allocation3], 1
    %s523 = scalar_lea.sflag [#allocation3], 1
    %524 = vsyncpa %s523, 1
    %525 = vsyncpa [#allocation6], 1
    %s526 = scalar_lea.sflag [#allocation6], 1
    %527 = vsyncpa %s526, 1
    %528 = vsyncpa [#allocation4], 1
    %s529 = scalar_lea.sflag [#allocation4], 1
    %530 = vsyncpa %s529, 1
    %531 = vsyncpa [#allocation10], 1
    %s532 = scalar_lea.sflag [#allocation10], 1
    %533 = vsyncpa %s532, 1

</llo_original>
